<compile_context>
chip_gen: v5e
topology: v5e:2x2
jax: 0.10.0
libtpu: 0.0.40
codegen_flags: <defaults>
</compile_context>

<pallas_src>
import jax
import jax.numpy as jnp
from jax.experimental import pallas as pl
from jax.experimental.pallas import tpu as pltpu

N_STATES = 4     # CartPole observation dim
N_ACTIONS = 2    # CartPole action dim
HIDDEN = 30

# Padded (lane/sublane-friendly) sizes used inside the kernel.
K_PAD = 8        # N_STATES 4 -> 8 sublanes
H_PAD = 128      # HIDDEN 30 -> 128 lanes
A_PAD = 128      # N_ACTIONS 2 -> 128 lanes (lane-dense output store)


def _round_up(x, m):
    return ((x + m - 1) // m) * m


def net_kernel(x_ref, w1_ref, b1_ref, w2_ref, b2_ref, o_ref):
    # x_ref: (TB, K_PAD), w1_ref: (K_PAD, H_PAD), b1_ref: (1, H_PAD)
    # w2_ref: (H_PAD, A_PAD), b2_ref: (1, A_PAD), o_ref: (TB, A_PAD)
    x = x_ref[...]                                            # (TB, 8)
    tb = x.shape[0]

    # Layer 1 on the VPU: K=4, so 4 broadcast multiply-adds beat MXU setup.
    h = jnp.broadcast_to(b1_ref[...], (tb, H_PAD))            # (TB, 128)
    for k in range(N_STATES):                                 # static unroll
        h = h + x[:, k:k + 1] * w1_ref[k:k + 1, :]
    h = jnp.maximum(h, 0.0)                                   # ReLU

    # Layer 2 on the MXU: dense (TB,128) @ (128,128) feed.
    y = jnp.dot(h, w2_ref[...],
                preferred_element_type=jnp.float32) + b2_ref[...]
    o_ref[...] = y                                            # lane-dense store


def net_forward(x, w1, b1, w2, b2, *, block_b=512):
    """x: (B, N_STATES); w1: (N_STATES, HIDDEN); b1: (HIDDEN,)
       w2: (HIDDEN, N_ACTIONS); b2: (N_ACTIONS,)  ->  (B, N_ACTIONS)."""
    B = x.shape[0]

    # Batch tiling: one block for small B, multiple parallel blocks for big B.
    TB = min(block_b, _round_up(B, 8))
    B_pad = _round_up(B, TB)

    f32 = jnp.float32
    x_p = jnp.zeros((B_pad, K_PAD), f32).at[:B, :N_STATES].set(x.astype(f32))
    w1_p = jnp.zeros((K_PAD, H_PAD), f32).at[:N_STATES, :HIDDEN].set(w1)
    b1_p = jnp.zeros((1, H_PAD), f32).at[0, :HIDDEN].set(b1)
    w2_p = jnp.zeros((H_PAD, A_PAD), f32).at[:HIDDEN, :N_ACTIONS].set(w2)
    b2_p = jnp.zeros((1, A_PAD), f32).at[0, :N_ACTIONS].set(b2)

    grid = (B_pad // TB,)
    out_padded = pl.pallas_call(
        net_kernel,
        out_shape=jax.ShapeDtypeStruct((B_pad, A_PAD), f32),
        grid=grid,
        in_specs=[
            pl.BlockSpec((TB, K_PAD), lambda i: (i, 0)),      # x: tiled over batch
            pl.BlockSpec((K_PAD, H_PAD), lambda i: (0, 0)),   # W1: block-invariant
            pl.BlockSpec((1, H_PAD), lambda i: (0, 0)),       # b1: block-invariant
            pl.BlockSpec((H_PAD, A_PAD), lambda i: (0, 0)),   # W2: block-invariant
            pl.BlockSpec((1, A_PAD), lambda i: (0, 0)),       # b2: block-invariant
        ],
        out_specs=pl.BlockSpec((TB, A_PAD), lambda i: (i, 0)),
        compiler_params=pltpu.CompilerParams(
            dimension_semantics=("parallel",)),               # 2x on v7x megacore
        cost_estimate=pl.CostEstimate(
            flops=2 * B_pad * (N_STATES * HIDDEN + HIDDEN * N_ACTIONS),
            transcendentals=0,
            bytes_accessed=(B_pad * (K_PAD + A_PAD)
                            + K_PAD * H_PAD + H_PAD
                            + H_PAD * A_PAD + A_PAD) * 4),
    )(x_p, w1_p, b1_p, w2_p, b2_p)

    # Discard padded batch rows / padded action columns outside the kernel.
    return out_padded[:B, :N_ACTIONS]


def init_params(key):
    """Matches PyTorch Net init: weight ~ N(0, 0.1), bias ~ default
    U(-1/sqrt(fan_in), 1/sqrt(fan_in)).  Weights stored transposed
    ((in, out)) so the kernel computes x @ W, identical to F.linear."""
    k1, k2, k3, k4 = jax.random.split(key, 4)
    w1 = (0.1 * jax.random.normal(k1, (N_STATES, HIDDEN))).astype(jnp.float32)
    b1 = jax.random.uniform(k2, (HIDDEN,), minval=-1.0, maxval=1.0,
                            dtype=jnp.float32) / jnp.sqrt(float(N_STATES))
    w2 = (0.1 * jax.random.normal(k3, (HIDDEN, N_ACTIONS))).astype(jnp.float32)
    b2 = jax.random.uniform(k4, (N_ACTIONS,), minval=-1.0, maxval=1.0,
                            dtype=jnp.float32) / jnp.sqrt(float(HIDDEN))
    return w1, b1, w2, b2


if __name__ == "__main__":
    key = jax.random.PRNGKey(0)
    kx, kp = jax.random.split(key)

    B = 8  # small batch of CartPole states
    x = jax.random.normal(kx, (B, N_STATES), dtype=jnp.float32)
    w1, b1, w2, b2 = init_params(kp)

    out = net_forward(x, w1, b1, w2, b2)
    out = jax.block_until_ready(out)

    # Pure-JAX reference (same math, no Pallas).
    ref = jnp.maximum(x @ w1 + b1[None, :], 0.0) @ w2 + b2[None, :]
    assert out.shape == (B, N_ACTIONS)
    assert jnp.allclose(out, ref, atol=1e-5, rtol=1e-5), (out, ref)

    # Also exercise a batch that spans multiple parallel grid blocks.
    B2 = 1024
    x2 = jax.random.normal(jax.random.PRNGKey(1), (B2, N_STATES),
                           dtype=jnp.float32)
    out2 = jax.block_until_ready(net_forward(x2, w1, b1, w2, b2))
    ref2 = jnp.maximum(x2 @ w1 + b1[None, :], 0.0) @ w2 + b2[None, :]
    assert out2.shape == (B2, N_ACTIONS)
    assert jnp.allclose(out2, ref2, atol=1e-5, rtol=1e-5)

    print("KERNEL_OK")
</pallas_src>

<mosaic_0001>
module attributes {stable_mosaic.version = 11 : i64} {
  func.func @net_kernel(%arg0: i32, %arg1: memref<8x8xf32, #tpu.memory_space<vmem>>, %arg2: memref<8x128xf32, #tpu.memory_space<vmem>>, %arg3: memref<1x128xf32, #tpu.memory_space<vmem>>, %arg4: memref<128x128xf32, #tpu.memory_space<vmem>>, %arg5: memref<1x128xf32, #tpu.memory_space<vmem>>, %arg6: memref<8x128xf32, #tpu.memory_space<vmem>>) attributes {dimension_semantics = [#tpu.dimension_semantics<parallel>], iteration_bounds = array<i64: 1>, scalar_prefetch = 0 : i64, scratch_operands = 0 : i64, tpu.core_type = #tpu.core_type<tc>, window_params = [{transform_indices = @transform_0, window_bounds = array<i64: 8, 8>}, {pipeline_mode = #tpu.pipeline_mode<synchronous>, transform_indices = @transform_1, window_bounds = array<i64: 8, 128>}, {pipeline_mode = #tpu.pipeline_mode<synchronous>, transform_indices = @transform_2, window_bounds = array<i64: 1, 128>}, {pipeline_mode = #tpu.pipeline_mode<synchronous>, transform_indices = @transform_3, window_bounds = array<i64: 128, 128>}, {pipeline_mode = #tpu.pipeline_mode<synchronous>, transform_indices = @transform_4, window_bounds = array<i64: 1, 128>}, {transform_indices = @transform_5, window_bounds = array<i64: 8, 128>}]} {
    %c0 = arith.constant 0 : index
    %c0_0 = arith.constant 0 : index
    %0 = vector.load %arg1[%c0, %c0_0] : memref<8x8xf32, #tpu.memory_space<vmem>>, vector<8x8xf32>
    %c0_1 = arith.constant 0 : index
    %c0_2 = arith.constant 0 : index
    %1 = vector.load %arg3[%c0_1, %c0_2] : memref<1x128xf32, #tpu.memory_space<vmem>>, vector<1x128xf32>
    %2 = vector.shape_cast %1 : vector<1x128xf32> to vector<1x128xf32>
    %3 = vector.broadcast %2 : vector<1x128xf32> to vector<8x128xf32>
    %4 = vector.extract_strided_slice %0 {offsets = [0, 0], sizes = [8, 1], strides = [1, 1]} : vector<8x8xf32> to vector<8x1xf32>
    %c0_3 = arith.constant 0 : index
    %c0_4 = arith.constant 0 : index
    %5 = vector.load %arg2[%c0_3, %c0_4] : memref<8x128xf32, #tpu.memory_space<vmem>>, vector<1x128xf32>
    %6 = vector.broadcast %4 : vector<8x1xf32> to vector<8x128xf32>
    %7 = vector.broadcast %5 : vector<1x128xf32> to vector<8x128xf32>
    %8 = arith.mulf %6, %7 : vector<8x128xf32>
    %9 = arith.addf %3, %8 : vector<8x128xf32>
    %10 = vector.extract_strided_slice %0 {offsets = [0, 1], sizes = [8, 1], strides = [1, 1]} : vector<8x8xf32> to vector<8x1xf32>
    %c1 = arith.constant 1 : index
    %c0_5 = arith.constant 0 : index
    %11 = vector.load %arg2[%c1, %c0_5] : memref<8x128xf32, #tpu.memory_space<vmem>>, vector<1x128xf32>
    %12 = vector.broadcast %10 : vector<8x1xf32> to vector<8x128xf32>
    %13 = vector.broadcast %11 : vector<1x128xf32> to vector<8x128xf32>
    %14 = arith.mulf %12, %13 : vector<8x128xf32>
    %15 = arith.addf %9, %14 : vector<8x128xf32>
    %16 = vector.extract_strided_slice %0 {offsets = [0, 2], sizes = [8, 1], strides = [1, 1]} : vector<8x8xf32> to vector<8x1xf32>
    %c2 = arith.constant 2 : index
    %c0_6 = arith.constant 0 : index
    %17 = vector.load %arg2[%c2, %c0_6] : memref<8x128xf32, #tpu.memory_space<vmem>>, vector<1x128xf32>
    %18 = vector.broadcast %16 : vector<8x1xf32> to vector<8x128xf32>
    %19 = vector.broadcast %17 : vector<1x128xf32> to vector<8x128xf32>
    %20 = arith.mulf %18, %19 : vector<8x128xf32>
    %21 = arith.addf %15, %20 : vector<8x128xf32>
    %22 = vector.extract_strided_slice %0 {offsets = [0, 3], sizes = [8, 1], strides = [1, 1]} : vector<8x8xf32> to vector<8x1xf32>
    %c3 = arith.constant 3 : index
    %c0_7 = arith.constant 0 : index
    %23 = vector.load %arg2[%c3, %c0_7] : memref<8x128xf32, #tpu.memory_space<vmem>>, vector<1x128xf32>
    %24 = vector.broadcast %22 : vector<8x1xf32> to vector<8x128xf32>
    %25 = vector.broadcast %23 : vector<1x128xf32> to vector<8x128xf32>
    %26 = arith.mulf %24, %25 : vector<8x128xf32>
    %27 = arith.addf %21, %26 : vector<8x128xf32>
    %cst = arith.constant 0.000000e+00 : f32
    %28 = vector.broadcast %cst : f32 to vector<8x128xf32>
    %29 = arith.maximumf %27, %28 : vector<8x128xf32>
    %c0_8 = arith.constant 0 : index
    %c0_9 = arith.constant 0 : index
    %30 = vector.load %arg4[%c0_8, %c0_9] : memref<128x128xf32, #tpu.memory_space<vmem>>, vector<128x128xf32>
    %cst_10 = arith.constant dense<0.000000e+00> : vector<8x128xf32>
    %31 = tpu.matmul %29, %30, %cst_10 {dimension_numbers = #tpu.dot_dimension_numbers<[1], [0], [0], [1], [0, 0, 1, 1], [], []>} : vector<8x128xf32>, vector<128x128xf32>, vector<8x128xf32> -> vector<8x128xf32>
    %c0_11 = arith.constant 0 : index
    %c0_12 = arith.constant 0 : index
    %32 = vector.load %arg5[%c0_11, %c0_12] : memref<1x128xf32, #tpu.memory_space<vmem>>, vector<1x128xf32>
    %33 = vector.broadcast %32 : vector<1x128xf32> to vector<8x128xf32>
    %34 = arith.addf %31, %33 : vector<8x128xf32>
    %c0_13 = arith.constant 0 : index
    %c0_14 = arith.constant 0 : index
    %35 = vector.load %arg6[%c0_13, %c0_14] : memref<8x128xf32, #tpu.memory_space<vmem>>, vector<8x128xf32>
    tpu.vector_store %arg6[%c0_13, %c0_14], %34 {strides = array<i32>} : memref<8x128xf32, #tpu.memory_space<vmem>>, vector<8x128xf32>,
    return
  }
  func.func @transform_0(%arg0: i32) -> (i32, i32) {
    %c0_i32 = arith.constant 0 : i32
    %c0_i32_0 = arith.constant 0 : i32
    return %arg0, %c0_i32 : i32, i32
  }
  func.func @transform_1(%arg0: i32) -> (i32, i32) {
    %c0_i32 = arith.constant 0 : i32
    %c0_i32_0 = arith.constant 0 : i32
    %c0_i32_1 = arith.constant 0 : i32
    return %c0_i32, %c0_i32_0 : i32, i32
  }
  func.func @transform_2(%arg0: i32) -> (i32, i32) {
    %c0_i32 = arith.constant 0 : i32
    %c0_i32_0 = arith.constant 0 : i32
    %c0_i32_1 = arith.constant 0 : i32
    return %c0_i32, %c0_i32_0 : i32, i32
  }
  func.func @transform_3(%arg0: i32) -> (i32, i32) {
    %c0_i32 = arith.constant 0 : i32
    %c0_i32_0 = arith.constant 0 : i32
    %c0_i32_1 = arith.constant 0 : i32
    return %c0_i32, %c0_i32_0 : i32, i32
  }
  func.func @transform_4(%arg0: i32) -> (i32, i32) {
    %c0_i32 = arith.constant 0 : i32
    %c0_i32_0 = arith.constant 0 : i32
    %c0_i32_1 = arith.constant 0 : i32
    return %c0_i32, %c0_i32_0 : i32, i32
  }
  func.func @transform_5(%arg0: i32) -> (i32, i32) {
    %c0_i32 = arith.constant 0 : i32
    %c0_i32_0 = arith.constant 0 : i32
    return %arg0, %c0_i32 : i32, i32
  }
}

</mosaic_0001>

<llo_original>
// kernel: tpu_custom_call.1
$region0: #{tpu_custom_call.1}
  #allocation0 [shape = 'u32[]', space=smem, size = 0x4, offset = 0x4, fixed_abs, tag = 'smem constant byte address 0x4 - core index']
  #allocation1 [shape = 'u32[72,128]{1,0:T(1,128)}', space=vmem, size = 0x9000, scoped, tag = 'internal scratch']
  %s0 = inlined_call_operand.hbm [shape: f32[8,8], index: 0, kind: input, shape index: {}]
  %s1 = inlined_call_operand.hbm [shape: f32[8,128], index: 1, kind: input, shape index: {}]
  %s2 = inlined_call_operand.vmem [shape: f32[1,128], index: 2, kind: input, shape index: {}]
  %s3 = inlined_call_operand.hbm [shape: f32[128,128], index: 3, kind: input, shape index: {}]
  %s4 = inlined_call_operand.vmem [shape: f32[1,128], index: 4, kind: input, shape index: {}]
  %s5 = inlined_call_operand.hbm [shape: f32[8,128], index: 5, kind: output, shape index: {}]
  %s6 = sld [smem:[#allocation0]]
  $region42: #{tpu_custom_call.1} parent=0
    _
  %s8 = ssub.s32 1, %s6
  %s9 = scalar_select 0, %s8, %s6
  $region1: #{tpu_custom_call.1} parent=0
    #allocation2 [shape = 'u8[4096]{0}', space=vmem, size = 0x1000, scoped, tag = 'input window, operand 0, single buffered']
    #allocation3 [shape = 's32[1]{0}', space=sflag, size = 0x4, scoped, tag = 'scoped memory for tpu_custom_call.1']
    #allocation4 [shape = 's32[1]{0}', space=sflag, size = 0x4, scoped, tag = 'scoped memory for tpu_custom_call.1']
    #allocation5 [shape = 'u8[4096]{0}', space=vmem, size = 0x1000, scoped, tag = 'input window, operand 1, single buffered']
    #allocation6 [shape = 's32[1]{0}', space=sflag, size = 0x4, scoped, tag = 'scoped memory for tpu_custom_call.1']
    #allocation7 [shape = 'u8[65536]{0}', space=vmem, size = 0x10000, scoped, tag = 'input window, operand 3, single buffered']
    #allocation8 [shape = 'u8[4096]{0}', space=vmem, size = 0x1000, scoped, tag = 'output window, operand 0, single buffered']
    %10 = vsyncpa [#allocation3], 0
    %11 = vsyncpa [#allocation6], 0
    %12 = vsyncpa [#allocation4], 0
    // Predicated region
    $region2: #{tpu_custom_call.1} parent=1 // pred_check
      _
    $region3: #{tpu_custom_call.1} parent=1 // pred_check_branch
      %14 = sbr.rel (0) target = $region5
    $region4: #{tpu_custom_call.1} parent=1 // pred_region
      %16 = vsyncadd [#allocation3], 0
      %s18 = sshll.u32 %s0, 4
      %s19 = int_to_ptr.hbm [resolvable:$true] %s18
      %s20 = sshll.u32 [#allocation2], 4
      %s21 = int_to_ptr.vmem [resolvable:$true] %s20
      %23 = dma.hbm_to_vmem [thread:$0]  %s19, 128, %s21, [#allocation3]
    $region5: #{tpu_custom_call.1} parent=1 // pred_fallthru
      _
    // Predicated region
    $region6: #{tpu_custom_call.1} parent=1 // pred_check
      _
    $region7: #{tpu_custom_call.1} parent=1 // pred_check_branch
      %25 = sbr.rel (0) target = $region9
    $region8: #{tpu_custom_call.1} parent=1 // pred_region
      %27 = vsyncadd [#allocation6], 0
      %s29 = sshll.u32 %s1, 4
      %s30 = int_to_ptr.hbm [resolvable:$true] %s29
      %s31 = sshll.u32 [#allocation5], 4
      %s32 = int_to_ptr.vmem [resolvable:$true] %s31
      %34 = dma.hbm_to_vmem [thread:$0]  %s30, 128, %s32, [#allocation6]
    $region9: #{tpu_custom_call.1} parent=1 // pred_fallthru
      _
    // Predicated region
    $region10: #{tpu_custom_call.1} parent=1 // pred_check
      _
    $region11: #{tpu_custom_call.1} parent=1 // pred_check_branch
      %36 = sbr.rel (0) target = $region13
    $region12: #{tpu_custom_call.1} parent=1 // pred_region
      _
    $region13: #{tpu_custom_call.1} parent=1 // pred_fallthru
      _
    // Predicated region
    $region14: #{tpu_custom_call.1} parent=1 // pred_check
      _
    $region15: #{tpu_custom_call.1} parent=1 // pred_check_branch
      %38 = sbr.rel (0) target = $region17
    $region16: #{tpu_custom_call.1} parent=1 // pred_region
      %40 = vsyncadd [#allocation6], 0
      %s41 = sshll.u32 %s3, 4
      %s42 = int_to_ptr.hbm [resolvable:$true] %s41
      %s43 = sshll.u32 [#allocation7], 4
      %s44 = int_to_ptr.vmem [resolvable:$true] %s43
      %49 = dma.hbm_to_vmem [thread:$0]  %s42, 2048, %s44, [#allocation6], 128, 128, 8
    $region17: #{tpu_custom_call.1} parent=1 // pred_fallthru
      _
    // Predicated region
    $region18: #{tpu_custom_call.1} parent=1 // pred_check
      _
    $region19: #{tpu_custom_call.1} parent=1 // pred_check_branch
      %51 = sbr.rel (0) target = $region21
    $region20: #{tpu_custom_call.1} parent=1 // pred_region
      _
    $region21: #{tpu_custom_call.1} parent=1 // pred_fallthru
      _
    // Predicated region
    $region22: #{tpu_custom_call.1} parent=1 // pred_check
      _
    $region23: #{tpu_custom_call.1} parent=1 // pred_check_branch
      %53 = sbr.rel (0) target = $region25
    $region24: #{tpu_custom_call.1} parent=1 // pred_region
      %55 = dma.done [#allocation3], 128
    $region25: #{tpu_custom_call.1} parent=1 // pred_fallthru
      _
    // Predicated region
    $region26: #{tpu_custom_call.1} parent=1 // pred_check
      _
    $region27: #{tpu_custom_call.1} parent=1 // pred_check_branch
      %57 = sbr.rel (0) target = $region29
    $region28: #{tpu_custom_call.1} parent=1 // pred_region
      %59 = dma.done [#allocation6], 128
    $region29: #{tpu_custom_call.1} parent=1 // pred_fallthru
      _
    // Predicated region
    $region30: #{tpu_custom_call.1} parent=1 // pred_check
      _
    $region31: #{tpu_custom_call.1} parent=1 // pred_check_branch
      %61 = sbr.rel (0) target = $region33
    $region32: #{tpu_custom_call.1} parent=1 // pred_region
      %63 = dma.done [#allocation6], 2048
    $region33: #{tpu_custom_call.1} parent=1 // pred_fallthru
      _
    %v64 = vld [vmem:[#allocation2] sm:$0xff]
    %v65 = vld [vmem:[%s2] sm:$0x1]
    %v67 = vperm.slane %v65, 0
    %v69 = vld [vmem:[#allocation5] sm:$0x1]
    %71 = vset.pattern.permute.xlu0 0
    %72 = vperm.xlu0 %71, %v64
    %v73 = vpop.permute.xlu0 %72
    %v75 = vperm.slane %v69, 0
    %v76 = vmul.f32 %v73, %v75
    %v77 = vadd.f32 %v67, %v76
    %v78 = vld [vmem:[#allocation5 + $0x1] sm:$0x1]
    %79 = vset.pattern.permute.xlu0 1
    %80 = vperm.xlu0 %79, %v64
    %v81 = vpop.permute.xlu0 %80
    %v83 = vperm.slane %v78, 0
    %v84 = vmul.f32 %v81, %v83
    %v85 = vadd.f32 %v77, %v84
    %v86 = vld [vmem:[#allocation5 + $0x2] sm:$0x1]
    %87 = vset.pattern.permute.xlu0 2
    %88 = vperm.xlu0 %87, %v64
    %v89 = vpop.permute.xlu0 %88
    %v91 = vperm.slane %v86, 0
    %v92 = vmul.f32 %v89, %v91
    %v93 = vadd.f32 %v85, %v92
    %v94 = vld [vmem:[#allocation5 + $0x3] sm:$0x1]
    %95 = vset.pattern.permute.xlu0 3
    %96 = vperm.xlu0 %95, %v64
    %v97 = vpop.permute.xlu0 %96
    %v99 = vperm.slane %v94, 0
    %v100 = vmul.f32 %v97, %v99
    %v101 = vadd.f32 %v93, %v100
    %v102 = vmax.f32 %v101, 0.0
    %v103 = vld [vmem:[#allocation7] sm:$0xff]
    %v104 = vld [vmem:[#allocation7 + $0x8] sm:$0xff]
    %v105 = vld [vmem:[#allocation7 + $0x10] sm:$0xff]
    %v106 = vld [vmem:[#allocation7 + $0x18] sm:$0xff]
    %v107 = vld [vmem:[#allocation7 + $0x20] sm:$0xff]
    %v108 = vld [vmem:[#allocation7 + $0x28] sm:$0xff]
    %v109 = vld [vmem:[#allocation7 + $0x30] sm:$0xff]
    %v110 = vld [vmem:[#allocation7 + $0x38] sm:$0xff]
    %v111 = vld [vmem:[#allocation7 + $0x40] sm:$0xff]
    %v112 = vld [vmem:[#allocation7 + $0x48] sm:$0xff]
    %v113 = vld [vmem:[#allocation7 + $0x50] sm:$0xff]
    %v114 = vld [vmem:[#allocation7 + $0x58] sm:$0xff]
    %v115 = vld [vmem:[#allocation7 + $0x60] sm:$0xff]
    %v116 = vld [vmem:[#allocation7 + $0x68] sm:$0xff]
    %v117 = vld [vmem:[#allocation7 + $0x70] sm:$0xff]
    %v118 = vld [vmem:[#allocation7 + $0x78] sm:$0xff]
    %v119 = vld [vmem:[%s4] sm:$0x1]
    %v121 = vperm.slane %v119, 0
    %123 = vmatpush.msra.mxu0 %v118
    %124 = vmatpush.msra.mxu0 %v117
    %125 = vmatpush.msra.mxu0 %v116
    %126 = vmatpush.msra.mxu0 %v115
    %127 = vmatpush.msra.mxu0 %v114
    %128 = vmatpush.msra.mxu0 %v113
    %129 = vmatpush.msra.mxu0 %v112
    %130 = vmatpush.msra.mxu0 %v111
    %131 = vmatpush.msra.mxu0 %v110
    %132 = vmatpush.msra.mxu0 %v109
    %133 = vmatpush.msra.mxu0 %v108
    %134 = vmatpush.msra.mxu0 %v107
    %135 = vmatpush.msra.mxu0 %v106
    %136 = vmatpush.msra.mxu0 %v105
    %137 = vmatpush.msra.mxu0 %v104
    %138 = vmatpush.msra.mxu0 %v103
    %139 = vmatmul.f32.gmra.mxu0 %v102
    %v140 = vpop.f32.mrf.mxu0
    %v141 = vadd.f32 %v121, %v140
    %142 = vdwg.mxu0
    %143 = vst [vmem:[#allocation8] sm:$0xff] %v141
    // Predicated region
    $region34: #{tpu_custom_call.1} parent=1 // pred_check
      _
    $region35: #{tpu_custom_call.1} parent=1 // pred_check_branch
      %145 = sbr.rel (0) target = $region37
    $region36: #{tpu_custom_call.1} parent=1 // pred_region
      %147 = vsyncadd [#allocation4], 0
      %s149 = sshll.u32 [#allocation8], 4
      %s150 = int_to_ptr.vmem [resolvable:$true] %s149
      %s151 = sshll.u32 %s5, 4
      %s152 = int_to_ptr.hbm [resolvable:$true] %s151
      %154 = dma.vmem_to_hbm [thread:$0]  %s150, 128, %s152, [#allocation4]
    $region37: #{tpu_custom_call.1} parent=1 // pred_fallthru
      _
    // Predicated region
    $region38: #{tpu_custom_call.1} parent=1 // pred_check
      _
    $region39: #{tpu_custom_call.1} parent=1 // pred_check_branch
      %156 = sbr.rel (0) target = $region41
    $region40: #{tpu_custom_call.1} parent=1 // pred_region
      %158 = dma.done [#allocation4], 128
    $region41: #{tpu_custom_call.1} parent=1 // pred_fallthru
      _
    %159 = vsyncpa [#allocation3], 1
    %160 = vsyncpa [#allocation6], 1
    %161 = vsyncpa [#allocation4], 1

</llo_original>
